<compile_context>
chip_gen: v5e
topology: v5e:2x2
jax: 0.10.0
libtpu: 0.0.40
codegen_flags: <defaults>
</compile_context>

<pallas_src>
import functools

import jax
import jax.numpy as jnp
from jax.experimental import pallas as pl
from jax.experimental.pallas import tpu as pltpu


# -----------------------------------------------------------------------------
# Kernels
# -----------------------------------------------------------------------------

def _add_coords_2d_kernel(x_ref, o_ref, *, C, TH, TW, with_r, xx_scale, yy_scale):
    """Blocks: x (1, C, TH, TW), out (1, C_out, TH, TW)."""
    # Pass the original channels straight through.
    o_ref[0, :C, :, :] = x_ref[0, :, :, :]

    row0 = pl.program_id(1) * TH            # H offset of this tile
    col0 = pl.program_id(2) * TW            # W offset of this tile
    ii = jax.lax.broadcasted_iota(jnp.int32, (TH, TW), 0) + row0
    jj = jax.lax.broadcasted_iota(jnp.int32, (TH, TW), 1) + col0

    xx = jj.astype(jnp.float32) * xx_scale - 1.0   # varies along lanes (last axis)
    yy = ii.astype(jnp.float32) * yy_scale - 1.0   # varies along rows

    o_ref[0, C, :, :] = xx.astype(o_ref.dtype)
    o_ref[0, C + 1, :, :] = yy.astype(o_ref.dtype)
    if with_r:
        rad = jnp.sqrt(xx * xx + yy * yy)
        o_ref[0, C + 2, :, :] = rad.astype(o_ref.dtype)


def _add_coords_packed_kernel(x_ref, o_ref, *, C, TH, log2w, with_r,
                              xx_scale, yy_scale):
    """Lane-dense path for W < 128 (power of two): spatial dims viewed as
    (H*W//128, 128).  Blocks: x (1, C, TH, 128), out (1, C_out, TH, 128)."""
    o_ref[0, :C, :, :] = x_ref[0, :, :, :]

    r0 = pl.program_id(1) * TH              # first 128-wide row of this tile
    row = jax.lax.broadcasted_iota(jnp.int32, (TH, 128), 0) + r0
    lane = jax.lax.broadcasted_iota(jnp.int32, (TH, 128), 1)

    # Global flat spatial index = row * 128 + lane; since 128 % W == 0:
    #   j = flat % W = lane & (W-1),  i = flat // W = row*(128//W) + lane >> log2w
    jj = lane & ((1 << log2w) - 1)
    ii = row * (128 >> log2w) + (lane >> log2w)

    xx = jj.astype(jnp.float32) * xx_scale - 1.0
    yy = ii.astype(jnp.float32) * yy_scale - 1.0

    o_ref[0, C, :, :] = xx.astype(o_ref.dtype)
    o_ref[0, C + 1, :, :] = yy.astype(o_ref.dtype)
    if with_r:
        rad = jnp.sqrt(xx * xx + yy * yy)
        o_ref[0, C + 2, :, :] = rad.astype(o_ref.dtype)


# -----------------------------------------------------------------------------
# Tiling / budget helpers
# -----------------------------------------------------------------------------

_COORD_TMP_BYTES = 16          # ~4 live f32/i32 coordinate temporaries per element
_DEFAULT_VMEM_CAP = 64 << 20   # v7x per-TensorCore physical VMEM (most restrictive)


def _cdiv(a, b):
    return -(-a // b)


def _round_up(x, m):
    return _cdiv(x, m) * m


def _round_down(x, m):
    return (x // m) * m


def _sublane_multiple(dtype):
    # Minimum second-to-last tile dim: 8 for 4-byte, 16 for 2-byte, 32 for 1-byte.
    return max(8, 32 // jnp.dtype(dtype).itemsize)


def _vmem_capacity_bytes():
    try:
        info = pltpu.get_tpu_info()
        cap = int(getattr(info, "vmem_capacity_bytes", 0) or 0)
        if cap > 0:
            return cap
    except Exception:
        pass
    return _DEFAULT_VMEM_CAP


def _tile_budget_bytes(vmem_cap):
    # ~28 MiB on 128-MiB-VMEM chips (v5e/v6e), ~24 MiB on v7x's 64 MiB.  Always
    # paired with an explicit vmem_limit_bytes so the 16/32 MiB scoped defaults
    # are never the binding constraint.
    return max(8 << 20, min(28 << 20, (3 * vmem_cap) // 8))


def _per_elem_bytes(C, C_out, dtype):
    # Double-buffered in+out tile bytes per spatial element + coord temporaries.
    return 2 * (C + C_out) * jnp.dtype(dtype).itemsize + _COORD_TMP_BYTES


def _choose_tiles_2d(H, W, C, C_out, dtype, budget):
    """Pick (th, tw) whose double-buffered footprint fits `budget`, else None."""
    sub = _sublane_multiple(dtype)
    per_elem = _per_elem_bytes(C, C_out, dtype)

    def th_for(tw_):
        t = budget // max(per_elem * tw_, 1)
        if t >= H:
            return H
        if H <= sub:
            return 0                         # cannot tile below the (tiny) full H
        return _round_down(min(t, H), sub)   # multiple of sub; 0 => does not fit

    tw = W
    th = th_for(tw)
    if th == 0 and W % 128 == 0 and W > 128:
        # Tile the lane axis in multiples of 128 so large C*W still fits VMEM
        # (matters first on v7x's 64 MiB).
        min_rows = min(H, sub)
        tw_try = min(W, _round_down(budget // max(per_elem * min_rows, 1), 128))
        if tw_try >= 128:
            tw = tw_try
            th = th_for(tw)
    if th == 0:
        return None
    return th, tw


def _cost_estimate(B, C, C_out, H, W, dtype, with_r):
    itemsize = jnp.dtype(dtype).itemsize
    return pl.CostEstimate(
        flops=4 * B * H * W * (2 if with_r else 1),
        transcendentals=(B * H * W) if with_r else 0,
        bytes_accessed=itemsize * B * (C + C_out) * H * W,
    )


# -----------------------------------------------------------------------------
# pallas_call wrappers
# -----------------------------------------------------------------------------

def _pallas_2d(x, with_r, C_out, xx_scale, yy_scale, th, tw, vmem_limit):
    B, C, H, W = x.shape
    grid = (B, _cdiv(H, th), _cdiv(W, tw))
    kernel = functools.partial(_add_coords_2d_kernel, C=C, TH=th, TW=tw,
                               with_r=with_r, xx_scale=xx_scale, yy_scale=yy_scale)
    return pl.pallas_call(
        kernel,
        out_shape=jax.ShapeDtypeStruct((B, C_out, H, W), x.dtype),
        grid_spec=pltpu.PrefetchScalarGridSpec(
            num_scalar_prefetch=0,
            grid=grid,
            in_specs=[pl.BlockSpec((1, C, th, tw), lambda b, h, w: (b, 0, h, w))],
            out_specs=pl.BlockSpec((1, C_out, th, tw), lambda b, h, w: (b, 0, h, w)),
        ),
        compiler_params=pltpu.CompilerParams(
            dimension_semantics=("parallel", "parallel", "parallel"),
            vmem_limit_bytes=int(vmem_limit)),
        cost_estimate=_cost_estimate(B, C, C_out, H, W, x.dtype, with_r),
    )(x)


def _pallas_packed(x, with_r, C_out, xx_scale, yy_scale, th, vmem_limit):
    B, C, H, W = x.shape
    HP = (H * W) // 128
    xp = x.reshape(B, C, HP, 128)            # free relabelling of contiguous memory
    log2w = W.bit_length() - 1
    grid = (B, _cdiv(HP, th))
    kernel = functools.partial(_add_coords_packed_kernel, C=C, TH=th, log2w=log2w,
                               with_r=with_r, xx_scale=xx_scale, yy_scale=yy_scale)
    out = pl.pallas_call(
        kernel,
        out_shape=jax.ShapeDtypeStruct((B, C_out, HP, 128), x.dtype),
        grid_spec=pltpu.PrefetchScalarGridSpec(
            num_scalar_prefetch=0,
            grid=grid,
            in_specs=[pl.BlockSpec((1, C, th, 128), lambda b, h: (b, 0, h, 0))],
            out_specs=pl.BlockSpec((1, C_out, th, 128), lambda b, h: (b, 0, h, 0)),
        ),
        compiler_params=pltpu.CompilerParams(
            dimension_semantics=("parallel", "parallel"),
            vmem_limit_bytes=int(vmem_limit)),
        cost_estimate=_cost_estimate(B, C, C_out, H, W, x.dtype, with_r),
    )(xp)
    return out.reshape(B, C_out, H, W)


def _add_coords_pallas(x, with_r, th=None, tw=None):
    B, C, H, W = x.shape
    C_out = C + (3 if with_r else 2)

    # PyTorch normalisation (x_dim == H, y_dim == W); only defined for H == W.
    # Size-1 spatial dims: PyTorch yields NaN (0/0); we emit -1 instead.
    xx_scale = 2.0 / (H - 1) if H > 1 else 0.0   # lane-varying plane, / (x_dim - 1)
    yy_scale = 2.0 / (W - 1) if W > 1 else 0.0   # row-varying plane,  / (y_dim - 1)

    vmem_cap = _vmem_capacity_bytes()
    budget = _tile_budget_bytes(vmem_cap)
    hard_budget = max(budget, vmem_cap - (16 << 20))
    per_elem = _per_elem_bytes(C, C_out, x.dtype)
    sub = _sublane_multiple(x.dtype)
    HW = H * W

    # Lane-dense path: W < 128 would otherwise waste (128 - W) lanes of every
    # store and pad every DMA row, so fold rows into the lane axis.
    packed = (W % 128 != 0) and (W & (W - 1) == 0) and (HW % 128 == 0)
    # TODO(synk): non-power-of-two W < 128 still takes the lane-padded 2-D path
    #   (a lane-dense variant needs an in-kernel div/mod by W).

    if packed:
        HP = HW // 128
        if th is None:
            tiles = (_choose_tiles_2d(HP, 128, C, C_out, x.dtype, budget)
                     or _choose_tiles_2d(HP, 128, C, C_out, x.dtype, hard_budget))
            if tiles is None:
                # TODO(synk): channel-tile the pass-through copy instead of bailing.
                return add_coords_ref(x, with_r)
            th = tiles[0]
            if B * _cdiv(HP, th) == 1 and HP > sub:
                # >= 2 grid steps so both of v7x's TensorCores get work.
                th = min(th, _round_up(_cdiv(HP, 2), sub))
        th = min(th, HP)
        need = per_elem * th * 128
        vmem_limit = min(vmem_cap, max(need + (8 << 20), 16 << 20))
        return _pallas_packed(x, with_r, C_out, xx_scale, yy_scale, th, vmem_limit)

    # 2-D (H, W)-tiled path (lane-dense already when W is a multiple of 128).
    if th is None and tw is None:
        tiles = (_choose_tiles_2d(H, W, C, C_out, x.dtype, budget)
                 or _choose_tiles_2d(H, W, C, C_out, x.dtype, hard_budget))
        if tiles is None:
            # TODO(synk): channel-tile the pass-through copy instead of bailing.
            return add_coords_ref(x, with_r)
        th, tw = tiles
        if B * _cdiv(H, th) * _cdiv(W, tw) == 1 and H > sub:
            th = min(th, _round_up(_cdiv(H, 2), sub))
    else:
        th = H if th is None else th
        tw = W if tw is None else tw
    th = min(th, H)
    tw = min(tw, W)
    need = per_elem * th * tw
    vmem_limit = min(vmem_cap, max(need + (8 << 20), 16 << 20))
    return _pallas_2d(x, with_r, C_out, xx_scale, yy_scale, th, tw, vmem_limit)


# -----------------------------------------------------------------------------
# Reference + dispatcher
# -----------------------------------------------------------------------------

def add_coords_ref(x, with_r=False):
    """Pure-JAX mirror of the PyTorch module (requires H == W)."""
    B, C, H, W = x.shape                    # H = x_dim, W = y_dim
    jj = jnp.broadcast_to(jnp.arange(W, dtype=jnp.float32)[None, :], (H, W))
    ii = jnp.broadcast_to(jnp.arange(H, dtype=jnp.float32)[:, None], (H, W))
    xx = (jj / (H - 1)) * 2.0 - 1.0         # xx_channel: / (x_dim - 1)
    yy = (ii / (W - 1)) * 2.0 - 1.0         # yy_channel: / (y_dim - 1)
    xx_c = jnp.broadcast_to(xx, (B, 1, H, W)).astype(x.dtype)
    yy_c = jnp.broadcast_to(yy, (B, 1, H, W)).astype(x.dtype)
    out = jnp.concatenate([x, xx_c, yy_c], axis=1)
    if with_r:
        rr = jnp.sqrt(xx_c.astype(jnp.float32) ** 2
                      + yy_c.astype(jnp.float32) ** 2).astype(x.dtype)
        out = jnp.concatenate([out, rr], axis=1)
    return out


_MIN_PALLAS_ELEMENTS = 1 << 16   # below this, pallas_call overhead dominates


def add_coords(x, with_r=False, *, force_pallas=False, th=None, tw=None):
    """Forward of the PyTorch `add_coords` module. x: (B, C, H, W), H == W."""
    B, C, H, W = x.shape
    assert H == W, "add_coords (like the PyTorch reference) needs square spatial dims"
    if not force_pallas and B * (C + 3) * H * W < _MIN_PALLAS_ELEMENTS:
        # Tiny shapes: XLA's fused iota+concat beats a pallas_call here.
        return add_coords_ref(x, with_r)
    return _add_coords_pallas(x, with_r, th=th, tw=tw)


# -----------------------------------------------------------------------------
# Self-test
# -----------------------------------------------------------------------------

if __name__ == "__main__":
    key = jax.random.PRNGKey(0)

    # 1) Lane-dense packed path (W = 16 < 128): the module's typical small case.
    B, C, H, W = 2, 4, 16, 16
    x = jax.random.normal(key, (B, C, H, W), dtype=jnp.float32)
    out = jax.block_until_ready(add_coords(x, with_r=False, force_pallas=True))
    ref = add_coords_ref(x, with_r=False)
    assert out.shape == (B, C + 2, H, W), out.shape
    assert jnp.allclose(out, ref, atol=1e-5), "packed path mismatch (no r)"

    # 2) Packed path, multi-tile grid + with_r (exercises the r0 offset).
    x2 = jax.random.normal(jax.random.PRNGKey(0), (2, 4, 64, 64), dtype=jnp.float32)
    out2 = jax.block_until_ready(add_coords(x2, with_r=True, force_pallas=True, th=8))
    ref2 = add_coords_ref(x2, with_r=True)
    assert out2.shape == (2, 7, 64, 64), out2.shape
    assert jnp.allclose(out2, ref2, atol=1e-5), "packed path mismatch (with r)"

    # 3) 2-D H/W-tiled path (W multiple of 128) with explicit sub-tiles so the
    #    row0/col0 offsets and with_r are exercised.
    x3 = jax.random.normal(jax.random.PRNGKey(0), (1, 3, 256, 256), dtype=jnp.float32)
    out3 = jax.block_until_ready(
        add_coords(x3, with_r=True, force_pallas=True, th=64, tw=128))
    ref3 = add_coords_ref(x3, with_r=True)
    assert out3.shape == (1, 6, 256, 256), out3.shape
    assert jnp.allclose(out3, ref3, atol=1e-5), "2-D path mismatch (with r)"

    # 4) 2-D path with auto tiling (also exercises the >=2-program split for B==1).
    out4 = jax.block_until_ready(add_coords(x3, with_r=False, force_pallas=True))
    ref4 = add_coords_ref(x3, with_r=False)
    assert jnp.allclose(out4, ref4, atol=1e-5), "2-D auto-tiled path mismatch"

    # 5) Dispatcher tiny-shape fallback (pure JAX).
    out5 = jax.block_until_ready(add_coords(x, with_r=False))
    assert jnp.allclose(out5, ref, atol=1e-5), "dispatcher fallback mismatch"

    print("KERNEL_OK")
</pallas_src>

<mosaic_0001>
module attributes {stable_mosaic.version = 11 : i64} {
  func.func @_add_coords_packed_kernel(%arg0: i32, %arg1: i32, %arg2: memref<1x4x2x128xf32, #tpu.memory_space<vmem>>, %arg3: memref<1x6x2x128xf32, #tpu.memory_space<vmem>>) attributes {dimension_semantics = [#tpu.dimension_semantics<parallel>, #tpu.dimension_semantics<parallel>], iteration_bounds = array<i64: 2, 1>, scalar_prefetch = 0 : i64, scratch_operands = 0 : i64, tpu.core_type = #tpu.core_type<tc>, window_params = [{transform_indices = @transform_0, window_bounds = array<i64: 1, 4, 2, 128>}, {transform_indices = @transform_1, window_bounds = array<i64: 1, 6, 2, 128>}]} {
    %c0 = arith.constant 0 : index
    %c0_0 = arith.constant 0 : index
    %c0_1 = arith.constant 0 : index
    %c0_2 = arith.constant 0 : index
    %0 = vector.load %arg2[%c0, %c0_0, %c0_1, %c0_2] : memref<1x4x2x128xf32, #tpu.memory_space<vmem>>, vector<1x4x2x128xf32>
    %1 = vector.shape_cast %0 : vector<1x4x2x128xf32> to vector<4x2x128xf32>
    %c0_3 = arith.constant 0 : index
    %c0_4 = arith.constant 0 : index
    %c0_5 = arith.constant 0 : index
    %c0_6 = arith.constant 0 : index
    %2 = vector.load %arg3[%c0_3, %c0_4, %c0_5, %c0_6] : memref<1x6x2x128xf32, #tpu.memory_space<vmem>>, vector<1x4x2x128xf32>
    %3 = vector.shape_cast %2 : vector<1x4x2x128xf32> to vector<4x2x128xf32>
    %4 = vector.shape_cast %1 : vector<4x2x128xf32> to vector<1x4x2x128xf32>
    tpu.vector_store %arg3[%c0_3, %c0_4, %c0_5, %c0_6], %4 {strides = array<i32>} : memref<1x6x2x128xf32, #tpu.memory_space<vmem>>, vector<1x4x2x128xf32>,
    %c2_i32 = arith.constant 2 : i32
    %5 = arith.muli %arg1, %c2_i32 : i32
    %6 = tpu.iota {dimensions = array<i32: 0>} : vector<2x128xi32>
    %7 = vector.broadcast %5 : i32 to vector<2x128xi32>
    %8 = arith.addi %6, %7 : vector<2x128xi32>
    %9 = tpu.iota {dimensions = array<i32: 1>} : vector<2x128xi32>
    %c15_i32 = arith.constant 15 : i32
    %10 = vector.broadcast %c15_i32 : i32 to vector<2x128xi32>
    %11 = arith.andi %9, %10 : vector<2x128xi32>
    %c8_i32 = arith.constant 8 : i32
    %12 = vector.broadcast %c8_i32 : i32 to vector<2x128xi32>
    %13 = arith.muli %8, %12 : vector<2x128xi32>
    %c4_i32 = arith.constant 4 : i32
    %14 = vector.broadcast %c4_i32 : i32 to vector<2x128xi32>
    %15 = arith.shrsi %9, %14 : vector<2x128xi32>
    %16 = arith.addi %13, %15 : vector<2x128xi32>
    %17 = arith.sitofp %11 : vector<2x128xi32> to vector<2x128xf32>
    %cst = arith.constant 0.13333334 : f32
    %18 = vector.broadcast %cst : f32 to vector<2x128xf32>
    %19 = arith.mulf %17, %18 : vector<2x128xf32>
    %cst_7 = arith.constant 1.000000e+00 : f32
    %20 = vector.broadcast %cst_7 : f32 to vector<2x128xf32>
    %21 = arith.subf %19, %20 : vector<2x128xf32>
    %22 = arith.sitofp %16 : vector<2x128xi32> to vector<2x128xf32>
    %cst_8 = arith.constant 0.13333334 : f32
    %23 = vector.broadcast %cst_8 : f32 to vector<2x128xf32>
    %24 = arith.mulf %22, %23 : vector<2x128xf32>
    %cst_9 = arith.constant 1.000000e+00 : f32
    %25 = vector.broadcast %cst_9 : f32 to vector<2x128xf32>
    %26 = arith.subf %24, %25 : vector<2x128xf32>
    %c0_10 = arith.constant 0 : index
    %c4 = arith.constant 4 : index
    %c0_11 = arith.constant 0 : index
    %c0_12 = arith.constant 0 : index
    %27 = vector.load %arg3[%c0_10, %c4, %c0_11, %c0_12] : memref<1x6x2x128xf32, #tpu.memory_space<vmem>>, vector<1x1x2x128xf32>
    %28 = vector.shape_cast %27 : vector<1x1x2x128xf32> to vector<2x128xf32>
    %29 = vector.shape_cast %21 : vector<2x128xf32> to vector<1x1x2x128xf32>
    tpu.vector_store %arg3[%c0_10, %c4, %c0_11, %c0_12], %29 {strides = array<i32>} : memref<1x6x2x128xf32, #tpu.memory_space<vmem>>, vector<1x1x2x128xf32>,
    %c0_13 = arith.constant 0 : index
    %c5 = arith.constant 5 : index
    %c0_14 = arith.constant 0 : index
    %c0_15 = arith.constant 0 : index
    %30 = vector.load %arg3[%c0_13, %c5, %c0_14, %c0_15] : memref<1x6x2x128xf32, #tpu.memory_space<vmem>>, vector<1x1x2x128xf32>
    %31 = vector.shape_cast %30 : vector<1x1x2x128xf32> to vector<2x128xf32>
    %32 = vector.shape_cast %26 : vector<2x128xf32> to vector<1x1x2x128xf32>
    tpu.vector_store %arg3[%c0_13, %c5, %c0_14, %c0_15], %32 {strides = array<i32>} : memref<1x6x2x128xf32, #tpu.memory_space<vmem>>, vector<1x1x2x128xf32>,
    return
  }
  func.func @transform_0(%arg0: i32, %arg1: i32) -> (i32, i32, i32, i32) {
    %c0_i32 = arith.constant 0 : i32
    %c0_i32_0 = arith.constant 0 : i32
    %c0_i32_1 = arith.constant 0 : i32
    return %arg0, %c0_i32, %arg1, %c0_i32_0 : i32, i32, i32, i32
  }
  func.func @transform_1(%arg0: i32, %arg1: i32) -> (i32, i32, i32, i32) {
    %c0_i32 = arith.constant 0 : i32
    %c0_i32_0 = arith.constant 0 : i32
    %c0_i32_1 = arith.constant 0 : i32
    return %arg0, %c0_i32, %arg1, %c0_i32_0 : i32, i32, i32, i32
  }
}

</mosaic_0001>

<llo_original>
// kernel: tpu_custom_call.1
$region0: #{tpu_custom_call.1}
  #allocation0 [shape = 'u32[]', space=smem, size = 0x4, offset = 0x4, fixed_abs, tag = 'smem constant byte address 0x4 - core index']
  #allocation1 [shape = 'u32[72,128]{1,0:T(1,128)}', space=vmem, size = 0x9000, scoped, tag = 'internal scratch']
  %s0 = inlined_call_operand.hbm [shape: f32[2,4,2,128], index: 0, kind: input, shape index: {}]
  %s1 = inlined_call_operand.hbm [shape: f32[2,6,2,128], index: 1, kind: output, shape index: {}]
  %s2 = sld [smem:[#allocation0]]
  $region41: #{tpu_custom_call.1} parent=0
    _
  %s4 = ssub.s32 1, %s2
  %s5 = scalar_select 0, %s4, %s2
  $region1: #{tpu_custom_call.1} parent=0
    #allocation2 [shape = 'u8[8192]{0}', space=vmem, size = 0x2000, scoped, tag = 'input window, operand 0']
    #allocation3 [shape = 's32[2]{0}', space=sflag, size = 0x8, scoped, tag = 'scoped memory for tpu_custom_call.1']
    #allocation4 [shape = 's32[2]{0}', space=sflag, size = 0x8, scoped, tag = 'scoped memory for tpu_custom_call.1']
    #allocation5 [shape = 'u8[12288]{0}', space=vmem, size = 0x3000, scoped, tag = 'output window, operand 0']
    %6 = vsyncpa [#allocation3], 0
    %s7 = scalar_lea.sflag [#allocation3], 1
    %8 = vsyncpa %s7, 0
    %9 = vsyncpa [#allocation4], 0
    %s10 = scalar_lea.sflag [#allocation4], 1
    %11 = vsyncpa %s10, 0
    loop: start=0, step=1, limit=4
    $region2: #{tpu_custom_call.1} parent=1 // loop_pre_header
      _
    $region3: #{tpu_custom_call.1} parent=1 // loop_header
      %s13 = sphi 0, %s17
      %p14 = scmp.ge.s32.totalorder %s13, 4
      %s20 = sphi 0, %s32
      %s21 = sphi 0, %s28
      %s22 = sphi 0, %s20
      %s23 = sphi 0, %s21
      %s24 = sphi 0, %s22
      %s25 = sphi 0, %s23
      %s37 = sphi 0, %s39
      %s40 = sphi 0, %s37
      %s41 = sphi 0, %s40
      %s57 = sphi 0, %s41
      %s65 = sphi 0, %s67
      %s68 = sphi 0, %s65
      %s69 = sphi 0, %s68
      %s85 = sphi 0, %s69
    $region4: #{tpu_custom_call.1} parent=1 // loop_header_branch
      %16 = sbr.rel (%p14) target = $region8
    $region5: #{tpu_custom_call.1} parent=1 // loop_body
      %s18 = ssub.s32 %s13, 1
      %s19 = ssub.s32 %s13, 2
      %s26 = sadd.s32 1, %s21
      %p27 = scmp.ge.s32.totalorder %s26, 1
      %s28 = scalar_select %p27, 0, %s26
      %s29 = sadd.s32 1, %s20
      %s30 = scalar_select %p27, %s29, %s20
      %p31 = scmp.ge.s32.totalorder %s30, 2
      %s32 = scalar_select %p31, 0, %s30
      %s33 = ssub.s32 %s20, %s32
      %s34 = ssub.s32 %s21, %s28
      %s35 = sor.u32 %s33, %s34
      %p36 = scmp.eq.s32.totalorder %s35, 0
      %s38 = sadd.s32 %s37, 1
      %s39 = scalar_select %p36, %s37, %s38
      %p42 = pneg %p36
      %p43 = scmp.eq.s32.totalorder %s13, 1
      %p44 = por %p42, %p43
      %p45 = scmp.ne.s32.totalorder %s37, %s40
      %p46 = scmp.eq.s32.totalorder %s13, 0
      %p47 = por %p45, %p46
      %p48 = scmp.ne.s32.totalorder %s37, %s40
      %p49 = scmp.eq.s32.totalorder %s18, 1
      %p50 = por %p48, %p49
      %p51 = scmp.ne.s32.totalorder %s40, %s41
      %p52 = scmp.eq.s32.totalorder %s18, 0
      %p53 = por %p51, %p52
      %p54 = scmp.ne.s32.totalorder %s40, %s41
      %p55 = scmp.eq.s32.totalorder %s19, 1
      %p56 = por %p54, %p55
      %p58 = scmp.ne.s32.totalorder %s41, %s57
      %p59 = scmp.eq.s32.totalorder %s19, 0
      %p60 = por %p58, %p59
      %s61 = ssub.s32 %s20, %s32
      %s62 = ssub.s32 %s21, %s28
      %s63 = sor.u32 %s61, %s62
      %p64 = scmp.eq.s32.totalorder %s63, 0
      %s66 = sadd.s32 %s65, 1
      %s67 = scalar_select %p64, %s65, %s66
      %p70 = pneg %p64
      %p71 = scmp.eq.s32.totalorder %s13, 1
      %p72 = por %p70, %p71
      %p73 = scmp.ne.s32.totalorder %s65, %s68
      %p74 = scmp.eq.s32.totalorder %s13, 0
      %p75 = por %p73, %p74
      %p76 = scmp.ne.s32.totalorder %s65, %s68
      %p77 = scmp.eq.s32.totalorder %s18, 1
      %p78 = por %p76, %p77
      %p79 = scmp.ne.s32.totalorder %s68, %s69
      %p80 = scmp.eq.s32.totalorder %s18, 0
      %p81 = por %p79, %p80
      %p82 = scmp.ne.s32.totalorder %s68, %s69
      %p83 = scmp.eq.s32.totalorder %s19, 1
      %p84 = por %p82, %p83
      %p86 = scmp.ne.s32.totalorder %s69, %s85
      %p87 = scmp.eq.s32.totalorder %s19, 0
      %p88 = por %p86, %p87
      %p89 = scmp.le.s32.totalorder 1, %s13
      %p90 = scmp.lt.s32.totalorder %s13, 3
      %p91 = pnand %p89, %p90
      %p92 = pneg %p91
      // Predicated region
      $region9: #{tpu_custom_call.1} parent=5 // pred_check
        _
      $region10: #{tpu_custom_call.1} parent=5 // pred_check_branch
        %94 = sbr.rel (%p91) target = $region12
      $region11: #{tpu_custom_call.1} parent=5 // pred_region
        %s95 = ssub.s32 %s13, 1
      $region12: #{tpu_custom_call.1} parent=5 // pred_fallthru
        _
      %p96 = scmp.lt.s32.totalorder %s13, 2
      // Predicated region
      $region13: #{tpu_custom_call.1} parent=5 // pred_check
        %p97 = pneg %p96
      $region14: #{tpu_custom_call.1} parent=5 // pred_check_branch
        %99 = sbr.rel (%p97) target = $region16
      $region15: #{tpu_custom_call.1} parent=5 // pred_region
        // Predicated region
        $region17: #{tpu_custom_call.1} parent=15 // pred_check
          %p100 = pneg %p47
        $region18: #{tpu_custom_call.1} parent=15 // pred_check_branch
          %102 = sbr.rel (%p100) target = $region20
        $region19: #{tpu_custom_call.1} parent=15 // pred_region
          %s103 = sand.u32 %s37, 1
          %s104 = scalar_lea.sflag [#allocation3], %s103
          %s105 = sand.u32 %s37, 1
          %s106 = smul.addr %s105, 8
          %s107 = scalar_lea.vmem [#allocation2], %s106
          %109 = vsyncadd %s104, 0
          %s110 = smul.addr %s20, 4
          %s111 = sadd.s32 %s21, %s110
          %s112 = smul.addr %s111, 2
          %s113 = scalar_lea.hbm %s0, %s112
          %s114 = sshll.u32 %s113, 4
          %s115 = int_to_ptr.hbm [resolvable:$true] %s114
          %s116 = sshll.u32 %s107, 4
          %s117 = int_to_ptr.vmem [resolvable:$true] %s116
          %122 = dma.hbm_to_vmem [thread:$0]  %s115, 128, %s117, %s104, 32, 32, 2
        $region20: #{tpu_custom_call.1} parent=15 // pred_fallthru
          _
      $region16: #{tpu_custom_call.1} parent=5 // pred_fallthru
        _
      %p123 = scmp.le.s32.totalorder 1, %s13
      %p124 = scmp.lt.s32.totalorder %s13, 3
      %p125 = pnand %p123, %p124
      %p126 = pneg %p125
      // Predicated region
      $region21: #{tpu_custom_call.1} parent=5 // pred_check
        _
      $region22: #{tpu_custom_call.1} parent=5 // pred_check_branch
        %128 = sbr.rel (%p125) target = $region24
      $region23: #{tpu_custom_call.1} parent=5 // pred_region
        %s129 = ssub.s32 %s13, 1
        %s130 = sand.u32 %s40, 1
        %s131 = scalar_lea.sflag [#allocation3], %s130
        %s132 = sand.u32 %s40, 1
        %s133 = smul.addr %s132, 8
        %s134 = scalar_lea.vmem [#allocation2], %s133
        // Predicated region
        $region25: #{tpu_custom_call.1} parent=23 // pred_check
          %p135 = pneg %p53
        $region26: #{tpu_custom_call.1} parent=23 // pred_check_branch
          %137 = sbr.rel (%p135) target = $region28
        $region27: #{tpu_custom_call.1} parent=23 // pred_region
          %139 = dma.done %s131, 128
        $region28: #{tpu_custom_call.1} parent=23 // pred_fallthru
          _
        %s140 = sand.u32 %s40, 1
        %s141 = scalar_lea.sflag [#allocation3], %s140
        %s142 = sand.u32 %s40, 1
        %s143 = smul.addr %s142, 8
        %s144 = scalar_lea.vmem [#allocation2], %s143
        %p145 = pneg %p53
        %p146 = pneg %p50
        %p147 = pneg %p81
        %p148 = pneg %p78
        %s149 = sand.u32 %s68, 1
        %s150 = scalar_lea.sflag [#allocation4], %s149
        %s151 = sand.u32 %s68, 1
        %s152 = smul.addr %s151, 12
        %s153 = scalar_lea.vmem [#allocation5], %s152
        %v154 = vld [vmem:[%s134] sm:$0x3]
        %v155 = vld [vmem:[%s134 + $0x2] sm:$0x3]
        %v156 = vld [vmem:[%s134 + $0x4] sm:$0x3]
        %v157 = vld [vmem:[%s134 + $0x6] sm:$0x3]
        %158 = vst [vmem:[%s153] sm:$0x3] %v154
        %159 = vst [vmem:[%s153 + $0x2] sm:$0x3] %v155
        %160 = vst [vmem:[%s153 + $0x4] sm:$0x3] %v156
        %161 = vst [vmem:[%s153 + $0x6] sm:$0x3] %v157
        %s162 = smul.u32 %s23, 2
        %v163 = vlaneseq
        %v164 = vshrl.u32 %v163, 7
        %v165 = vstv %s162
        %v166 = vadd.s32 %v164, %v165
        %v167 = vlaneseq
        %v168 = vand.u32 %v167, 127
        %v169 = vand.u32 %v168, 15
        %v170 = vmul.u32 %v166, 8
        %v171 = vshra.s32 %v168, 4
        %v172 = vadd.s32 %v170, %v171
        %v173 = vcvt.s32.f32 %v169
        %v174 = vmul.f32 %v173, 0.13333334
        %v175 = vsub.f32 %v174, 1.0
        %v176 = vcvt.s32.f32 %v172
        %v177 = vmul.f32 %v176, 0.13333334
        %v178 = vsub.f32 %v177, 1.0
        %s179 = scalar_lea.vmem %s153, 8 [#allocation5]
        %180 = vst [vmem:[%s179] sm:$0x3] %v175
        %s181 = scalar_lea.vmem %s153, 10 [#allocation5]
        %182 = vst [vmem:[%s181] sm:$0x3] %v178
        %s183 = sand.u32 %s68, 1
        %s184 = scalar_lea.sflag [#allocation4], %s183
        %s185 = sand.u32 %s68, 1
        %s186 = smul.addr %s185, 12
        %s187 = scalar_lea.vmem [#allocation5], %s186
        // Predicated region
        $region29: #{tpu_custom_call.1} parent=23 // pred_check
          %p188 = pneg %p78
        $region30: #{tpu_custom_call.1} parent=23 // pred_check_branch
          %190 = sbr.rel (%p188) target = $region32
        $region31: #{tpu_custom_call.1} parent=23 // pred_region
          %192 = vsyncadd %s184, 0
          %s193 = smul.addr %s22, 6
          %s194 = sadd.s32 %s23, %s193
          %s195 = smul.addr %s194, 2
          %s196 = scalar_lea.hbm %s1, %s195
          %s197 = sshll.u32 %s187, 4
          %s198 = int_to_ptr.vmem [resolvable:$true] %s197
          %s199 = sshll.u32 %s196, 4
          %s200 = int_to_ptr.hbm [resolvable:$true] %s199
          %205 = dma.vmem_to_hbm [thread:$0]  %s198, 192, %s200, %s184, 32, 32, 2
        $region32: #{tpu_custom_call.1} parent=23 // pred_fallthru
          _
      $region24: #{tpu_custom_call.1} parent=5 // pred_fallthru
        _
      %p206 = scmp.le.s32.totalorder 2, %s13
      // Predicated region
      $region33: #{tpu_custom_call.1} parent=5 // pred_check
        %p207 = pneg %p206
      $region34: #{tpu_custom_call.1} parent=5 // pred_check_branch
        %209 = sbr.rel (%p207) target = $region36
      $region35: #{tpu_custom_call.1} parent=5 // pred_region
        %s210 = ssub.s32 %s13, 2
        // Predicated region
        $region37: #{tpu_custom_call.1} parent=35 // pred_check
          %p211 = pneg %p84
        $region38: #{tpu_custom_call.1} parent=35 // pred_check_branch
          %213 = sbr.rel (%p211) target = $region40
        $region39: #{tpu_custom_call.1} parent=35 // pred_region
          %s214 = sand.u32 %s69, 1
          %s215 = scalar_lea.sflag [#allocation4], %s214
          %s216 = sand.u32 %s69, 1
          %s217 = smul.addr %s216, 12
          %s218 = scalar_lea.vmem [#allocation5], %s217
          %220 = dma.done %s215, 192
        $region40: #{tpu_custom_call.1} parent=35 // pred_fallthru
          _
      $region36: #{tpu_custom_call.1} parent=5 // pred_fallthru
        _
    $region6: #{tpu_custom_call.1} parent=1 // loop_footer
      %s17 = sadd.s32 1, %s13
    $region7: #{tpu_custom_call.1} parent=1 // loop_footer_branch
      %12 = sbr.rel target = $region3
    $region8: #{tpu_custom_call.1} parent=1 // loop_exit
      _
    %221 = vsyncpa [#allocation3], 1
    %s222 = scalar_lea.sflag [#allocation3], 1
    %223 = vsyncpa %s222, 1
    %224 = vsyncpa [#allocation4], 1
    %s225 = scalar_lea.sflag [#allocation4], 1
    %226 = vsyncpa %s225, 1

</llo_original>
